<compile_context>
chip_gen: v6e
topology: v6e:2x2x1
jax: 0.10.0
libtpu: 0.0.40
codegen_flags: <defaults>
</compile_context>

<pallas_src>
import functools

import jax
import jax.numpy as jnp
from jax.experimental import pallas as pl
from jax.experimental.pallas import tpu as pltpu


def _moving_avg_kernel(x_ref, o_ref, *, kernel_size, stride, pad, seq_len,
                       l_out):
    # x_ref: (1, L, TC) input tile; o_ref: (1, L_out, TC) output tile.
    #
    # Build the banded averaging matrix A (L_out, L) in-kernel.  Replicate
    # padding is folded into A: A[i, j] = (# taps of output row i that land,
    # after clamping to [0, L-1], on input row j).  For output row i the
    # (unclamped) tap positions span [w_lo, w_hi] = [i*stride - pad,
    # i*stride - pad + k - 1]; column 0 absorbs all taps <= 0 and column L-1
    # absorbs all taps >= L-1.
    row = jax.lax.broadcasted_iota(jnp.int32, (l_out, seq_len), 0)
    col = jax.lax.broadcasted_iota(jnp.int32, (l_out, seq_len), 1)
    w_lo = row * stride - pad
    w_hi = w_lo + (kernel_size - 1)
    lo = jnp.where(col == 0, w_lo, col)            # front-clamp region
    hi = jnp.where(col == seq_len - 1, w_hi, col)  # back-clamp region
    count = jnp.minimum(hi, w_hi) - jnp.maximum(lo, w_lo) + 1
    count = jnp.clip(count, 0, kernel_size)
    a = count.astype(x_ref.dtype)  # small integer counts: exact even in bf16

    # Single MXU matmul per grid step, f32 accumulation, one scale, one
    # full-block store.
    acc = jnp.dot(a, x_ref[0], preferred_element_type=jnp.float32)
    o_ref[0, :, :] = (acc * (1.0 / kernel_size)).astype(o_ref.dtype)


def moving_average(x, kernel_size, stride=1):
    """Equivalent of MovingAverage(kernel_size, stride).forward(x), x: (B, L, C)."""
    B, L, C = x.shape
    pad = (kernel_size - 1) // 2
    Lp = L + 2 * pad
    L_out = (Lp - kernel_size) // stride + 1
    assert L_out >= 1

    # Channel tile: lane-dense multiples of 128 (up to 512) when C allows,
    # otherwise the full channel axis (block dim == array dim satisfies the
    # (8,128) divisibility rule even when C is not a multiple of 128).
    TC = C
    if C % 128 == 0:
        for cand in (512, 384, 256, 128):
            if cand <= C and C % cand == 0:
                TC = cand
                break

    itemsize = jnp.dtype(x.dtype).itemsize
    block_bytes = (L + L_out) * TC * itemsize + L_out * L * 4
    # Double-buffered in/out blocks + headroom; cap so it stays safe on
    # v7x's 64 MiB physical VMEM.
    vmem_limit = int(min(max(4 * block_bytes + (2 << 20), 16 << 20), 32 << 20))

    kernel = functools.partial(
        _moving_avg_kernel, kernel_size=kernel_size, stride=stride, pad=pad,
        seq_len=L, l_out=L_out)

    return pl.pallas_call(
        kernel,
        out_shape=jax.ShapeDtypeStruct((B, L_out, C), x.dtype),
        grid=(B, C // TC),
        in_specs=[pl.BlockSpec((1, L, TC), lambda b, c: (b, 0, c))],
        out_specs=pl.BlockSpec((1, L_out, TC), lambda b, c: (b, 0, c)),
        compiler_params=pltpu.CompilerParams(
            dimension_semantics=("parallel", "parallel"),
            vmem_limit_bytes=vmem_limit),
    )(x)


def _reference(x, kernel_size, stride):
    # Pure-JAX reference mirroring the PyTorch forward exactly.
    pad = (kernel_size - 1) // 2
    front = jnp.repeat(x[:, 0:1, :], pad, axis=1)
    end = jnp.repeat(x[:, -1:, :], pad, axis=1)
    xp = jnp.concatenate([front, x, end], axis=1)
    Lp = xp.shape[1]
    L_out = (Lp - kernel_size) // stride + 1
    windows = jnp.stack(
        [xp[:, k * stride:k * stride + kernel_size, :] for k in range(L_out)],
        axis=1,
    )  # (B, L_out, kernel_size, C)
    return jnp.mean(windows, axis=2)


if __name__ == "__main__":
    key = jax.random.PRNGKey(0)
    k1, k2, k3, k4 = jax.random.split(key, 4)

    # Primary check: small shapes consistent with the module's forward.
    B, L, C = 2, 8, 32
    kernel_size, stride = 5, 1
    x = jax.random.normal(k1, (B, L, C), dtype=jnp.float32)
    out = jax.block_until_ready(moving_average(x, kernel_size, stride))
    ref = _reference(x, kernel_size, stride)
    assert out.shape == ref.shape, (out.shape, ref.shape)
    assert jnp.allclose(out, ref, atol=1e-5, rtol=1e-5), "mismatch vs reference"

    # Autoformer-scale kernel_size (25).
    x2 = jax.random.normal(k2, (2, 40, 32), dtype=jnp.float32)
    out2 = jax.block_until_ready(moving_average(x2, 25, 1))
    ref2 = _reference(x2, 25, 1)
    assert out2.shape == ref2.shape, (out2.shape, ref2.shape)
    assert jnp.allclose(out2, ref2, atol=1e-5, rtol=1e-5), "mismatch (k=25)"

    # stride > 1 / even kernel path (previously unexercised).
    x3 = jax.random.normal(k3, (2, 12, 32), dtype=jnp.float32)
    out3 = jax.block_until_ready(moving_average(x3, 4, 2))
    ref3 = _reference(x3, 4, 2)
    assert out3.shape == ref3.shape, (out3.shape, ref3.shape)
    assert jnp.allclose(out3, ref3, atol=1e-5, rtol=1e-5), "mismatch (k=4,s=2)"

    # Lane-dense channel-tile path (C multiple of 128).
    x4 = jax.random.normal(k4, (2, 24, 256), dtype=jnp.float32)
    out4 = jax.block_until_ready(moving_average(x4, 7, 1))
    ref4 = _reference(x4, 7, 1)
    assert out4.shape == ref4.shape, (out4.shape, ref4.shape)
    assert jnp.allclose(out4, ref4, atol=1e-5, rtol=1e-5), "mismatch (C=256)"

    print("KERNEL_OK")
</pallas_src>

<mosaic_0001>
module attributes {stable_mosaic.version = 11 : i64} {
  func.func @_moving_avg_kernel(%arg0: i32, %arg1: i32, %arg2: memref<1x8x32xf32, #tpu.memory_space<vmem>>, %arg3: memref<1x8x32xf32, #tpu.memory_space<vmem>>) attributes {dimension_semantics = [#tpu.dimension_semantics<parallel>, #tpu.dimension_semantics<parallel>], iteration_bounds = array<i64: 2, 1>, scalar_prefetch = 0 : i64, scratch_operands = 0 : i64, tpu.core_type = #tpu.core_type<tc>, window_params = [{transform_indices = @transform_0, window_bounds = array<i64: 1, 8, 32>}, {transform_indices = @transform_1, window_bounds = array<i64: 1, 8, 32>}]} {
    %0 = tpu.iota {dimensions = array<i32: 0>} : vector<8x8xi32>
    %1 = tpu.iota {dimensions = array<i32: 1>} : vector<8x8xi32>
    %c1_i32 = arith.constant 1 : i32
    %2 = vector.broadcast %c1_i32 : i32 to vector<8x8xi32>
    %3 = arith.muli %0, %2 : vector<8x8xi32>
    %c2_i32 = arith.constant 2 : i32
    %4 = vector.broadcast %c2_i32 : i32 to vector<8x8xi32>
    %5 = arith.subi %3, %4 : vector<8x8xi32>
    %c4_i32 = arith.constant 4 : i32
    %6 = vector.broadcast %c4_i32 : i32 to vector<8x8xi32>
    %7 = arith.addi %5, %6 : vector<8x8xi32>
    %c0_i32 = arith.constant 0 : i32
    %8 = vector.broadcast %c0_i32 : i32 to vector<8x8xi32>
    %9 = arith.cmpi eq, %1, %8 : vector<8x8xi32>
    %10 = arith.select %9, %5, %1 : vector<8x8xi1>, vector<8x8xi32>
    %c7_i32 = arith.constant 7 : i32
    %11 = vector.broadcast %c7_i32 : i32 to vector<8x8xi32>
    %12 = arith.cmpi eq, %1, %11 : vector<8x8xi32>
    %13 = arith.select %12, %7, %1 : vector<8x8xi1>, vector<8x8xi32>
    %14 = arith.minsi %13, %7 : vector<8x8xi32>
    %15 = arith.maxsi %10, %5 : vector<8x8xi32>
    %16 = arith.subi %14, %15 : vector<8x8xi32>
    %c1_i32_0 = arith.constant 1 : i32
    %17 = vector.broadcast %c1_i32_0 : i32 to vector<8x8xi32>
    %18 = arith.addi %16, %17 : vector<8x8xi32>
    %c0_i32_1 = arith.constant 0 : i32
    %c5_i32 = arith.constant 5 : i32
    %19 = vector.broadcast %c0_i32_1 : i32 to vector<8x8xi32>
    %20 = arith.maxsi %19, %18 : vector<8x8xi32>
    %21 = vector.broadcast %c5_i32 : i32 to vector<8x8xi32>
    %22 = arith.minsi %21, %20 : vector<8x8xi32>
    %23 = arith.sitofp %22 : vector<8x8xi32> to vector<8x8xf32>
    %c0 = arith.constant 0 : index
    %c0_2 = arith.constant 0 : index
    %c0_3 = arith.constant 0 : index
    %24 = vector.load %arg2[%c0, %c0_2, %c0_3] : memref<1x8x32xf32, #tpu.memory_space<vmem>>, vector<1x8x32xf32>
    %25 = vector.shape_cast %24 : vector<1x8x32xf32> to vector<8x32xf32>
    %cst = arith.constant dense<0.000000e+00> : vector<8x32xf32>
    %26 = tpu.matmul %23, %25, %cst {dimension_numbers = #tpu.dot_dimension_numbers<[1], [0], [0], [1], [0, 0, 1, 1], [], []>} : vector<8x8xf32>, vector<8x32xf32>, vector<8x32xf32> -> vector<8x32xf32>
    %cst_4 = arith.constant 2.000000e-01 : f32
    %27 = vector.broadcast %cst_4 : f32 to vector<8x32xf32>
    %28 = arith.mulf %26, %27 : vector<8x32xf32>
    %c0_5 = arith.constant 0 : index
    %c0_6 = arith.constant 0 : index
    %c0_7 = arith.constant 0 : index
    %29 = vector.load %arg3[%c0_5, %c0_6, %c0_7] : memref<1x8x32xf32, #tpu.memory_space<vmem>>, vector<1x8x32xf32>
    %30 = vector.shape_cast %29 : vector<1x8x32xf32> to vector<8x32xf32>
    %31 = vector.shape_cast %28 : vector<8x32xf32> to vector<1x8x32xf32>
    tpu.vector_store %arg3[%c0_5, %c0_6, %c0_7], %31 {strides = array<i32>} : memref<1x8x32xf32, #tpu.memory_space<vmem>>, vector<1x8x32xf32>,
    return
  }
  func.func @transform_0(%arg0: i32, %arg1: i32) -> (i32, i32, i32) {
    %c0_i32 = arith.constant 0 : i32
    %c0_i32_0 = arith.constant 0 : i32
    return %arg0, %c0_i32, %arg1 : i32, i32, i32
  }
  func.func @transform_1(%arg0: i32, %arg1: i32) -> (i32, i32, i32) {
    %c0_i32 = arith.constant 0 : i32
    %c0_i32_0 = arith.constant 0 : i32
    return %arg0, %c0_i32, %arg1 : i32, i32, i32
  }
}

</mosaic_0001>

<llo_original>
// kernel: tpu_custom_call.1
$region0: #{tpu_custom_call.1}
  #allocation0 [shape = 'u32[]', space=smem, size = 0x4, offset = 0x4, fixed_abs, tag = 'smem constant byte address 0x4 - core index']
  #allocation1 [shape = 'u32[144,128]{1,0:T(1,128)}', space=vmem, size = 0x12000, scoped, tag = 'internal scratch']
  %s0 = inlined_call_operand.hbm [shape: f32[2,8,32], index: 0, kind: input, shape index: {}]
  %s1 = inlined_call_operand.hbm [shape: f32[2,8,32], index: 1, kind: output, shape index: {}]
  %s2 = sld [smem:[#allocation0]]
  $region41: #{tpu_custom_call.1} parent=0
    _
  %s4 = ssub.s32 1, %s2
  %s5 = scalar_select 0, %s4, %s2
  $region1: #{tpu_custom_call.1} parent=0
    #allocation2 [shape = 'u8[8192]{0}', space=vmem, size = 0x2000, scoped, tag = 'input window, operand 0']
    #allocation3 [shape = 's32[2]{0}', space=sflag, size = 0x8, scoped, tag = 'scoped memory for tpu_custom_call.1']
    #allocation4 [shape = 's32[2]{0}', space=sflag, size = 0x8, scoped, tag = 'scoped memory for tpu_custom_call.1']
    #allocation5 [shape = 'u8[8192]{0}', space=vmem, size = 0x2000, scoped, tag = 'output window, operand 0']
    %6 = vsyncpa [#allocation3], 0
    %s7 = scalar_lea.sflag [#allocation3], 1
    %8 = vsyncpa %s7, 0
    %9 = vsyncpa [#allocation4], 0
    %s10 = scalar_lea.sflag [#allocation4], 1
    %11 = vsyncpa %s10, 0
    loop: start=0, step=1, limit=4
    $region2: #{tpu_custom_call.1} parent=1 // loop_pre_header
      _
    $region3: #{tpu_custom_call.1} parent=1 // loop_header
      %s13 = sphi 0, %s17
      %p14 = scmp.ge.s32.totalorder %s13, 4
      %s20 = sphi 0, %s32
      %s21 = sphi 0, %s28
      %s22 = sphi 0, %s20
      %s23 = sphi 0, %s21
      %s24 = sphi 0, %s22
      %s25 = sphi 0, %s23
      %s37 = sphi 0, %s39
      %s40 = sphi 0, %s37
      %s41 = sphi 0, %s40
      %s57 = sphi 0, %s41
      %s65 = sphi 0, %s67
      %s68 = sphi 0, %s65
      %s69 = sphi 0, %s68
      %s85 = sphi 0, %s69
    $region4: #{tpu_custom_call.1} parent=1 // loop_header_branch
      %16 = sbr.rel (%p14) target = $region8
    $region5: #{tpu_custom_call.1} parent=1 // loop_body
      %s18 = ssub.s32 %s13, 1
      %s19 = ssub.s32 %s13, 2
      %s26 = sadd.s32 1, %s21
      %p27 = scmp.ge.s32.totalorder %s26, 1
      %s28 = scalar_select %p27, 0, %s26
      %s29 = sadd.s32 1, %s20
      %s30 = scalar_select %p27, %s29, %s20
      %p31 = scmp.ge.s32.totalorder %s30, 2
      %s32 = scalar_select %p31, 0, %s30
      %s33 = ssub.s32 %s20, %s32
      %s34 = ssub.s32 %s21, %s28
      %s35 = sor.u32 %s33, %s34
      %p36 = scmp.eq.s32.totalorder %s35, 0
      %s38 = sadd.s32 %s37, 1
      %s39 = scalar_select %p36, %s37, %s38
      %p42 = pneg %p36
      %p43 = scmp.eq.s32.totalorder %s13, 1
      %p44 = por %p42, %p43
      %p45 = scmp.ne.s32.totalorder %s37, %s40
      %p46 = scmp.eq.s32.totalorder %s13, 0
      %p47 = por %p45, %p46
      %p48 = scmp.ne.s32.totalorder %s37, %s40
      %p49 = scmp.eq.s32.totalorder %s18, 1
      %p50 = por %p48, %p49
      %p51 = scmp.ne.s32.totalorder %s40, %s41
      %p52 = scmp.eq.s32.totalorder %s18, 0
      %p53 = por %p51, %p52
      %p54 = scmp.ne.s32.totalorder %s40, %s41
      %p55 = scmp.eq.s32.totalorder %s19, 1
      %p56 = por %p54, %p55
      %p58 = scmp.ne.s32.totalorder %s41, %s57
      %p59 = scmp.eq.s32.totalorder %s19, 0
      %p60 = por %p58, %p59
      %s61 = ssub.s32 %s20, %s32
      %s62 = ssub.s32 %s21, %s28
      %s63 = sor.u32 %s61, %s62
      %p64 = scmp.eq.s32.totalorder %s63, 0
      %s66 = sadd.s32 %s65, 1
      %s67 = scalar_select %p64, %s65, %s66
      %p70 = pneg %p64
      %p71 = scmp.eq.s32.totalorder %s13, 1
      %p72 = por %p70, %p71
      %p73 = scmp.ne.s32.totalorder %s65, %s68
      %p74 = scmp.eq.s32.totalorder %s13, 0
      %p75 = por %p73, %p74
      %p76 = scmp.ne.s32.totalorder %s65, %s68
      %p77 = scmp.eq.s32.totalorder %s18, 1
      %p78 = por %p76, %p77
      %p79 = scmp.ne.s32.totalorder %s68, %s69
      %p80 = scmp.eq.s32.totalorder %s18, 0
      %p81 = por %p79, %p80
      %p82 = scmp.ne.s32.totalorder %s68, %s69
      %p83 = scmp.eq.s32.totalorder %s19, 1
      %p84 = por %p82, %p83
      %p86 = scmp.ne.s32.totalorder %s69, %s85
      %p87 = scmp.eq.s32.totalorder %s19, 0
      %p88 = por %p86, %p87
      %p89 = scmp.le.s32.totalorder 1, %s13
      %p90 = scmp.lt.s32.totalorder %s13, 3
      %p91 = pnand %p89, %p90
      %p92 = pneg %p91
      // Predicated region
      $region9: #{tpu_custom_call.1} parent=5 // pred_check
        _
      $region10: #{tpu_custom_call.1} parent=5 // pred_check_branch
        %94 = sbr.rel (%p91) target = $region12
      $region11: #{tpu_custom_call.1} parent=5 // pred_region
        %s95 = ssub.s32 %s13, 1
      $region12: #{tpu_custom_call.1} parent=5 // pred_fallthru
        _
      %p96 = scmp.lt.s32.totalorder %s13, 2
      // Predicated region
      $region13: #{tpu_custom_call.1} parent=5 // pred_check
        %p97 = pneg %p96
      $region14: #{tpu_custom_call.1} parent=5 // pred_check_branch
        %99 = sbr.rel (%p97) target = $region16
      $region15: #{tpu_custom_call.1} parent=5 // pred_region
        // Predicated region
        $region17: #{tpu_custom_call.1} parent=15 // pred_check
          %p100 = pneg %p47
        $region18: #{tpu_custom_call.1} parent=15 // pred_check_branch
          %102 = sbr.rel (%p100) target = $region20
        $region19: #{tpu_custom_call.1} parent=15 // pred_region
          %s103 = sand.u32 %s37, 1
          %s104 = scalar_lea.sflag [#allocation3], %s103
          %s105 = sand.u32 %s37, 1
          %s106 = smul.addr %s105, 8
          %s107 = scalar_lea.vmem [#allocation2], %s106
          %s109 = ssub.s32 128, 128
          %110 = vsyncadd %s104, %s109
          %s111 = sadd.s32 %s21, %s20
          %s112 = smul.addr %s111, 128
          %s113 = scalar_lea.hbm %s0, %s112
          %s115 = sshll.u32 %s107, 4
          %s116 = int_to_ptr.vmem [resolvable:$true] %s115
          %118 = dma.hbm_to_vmem [thread:$0]  %s113, 128, %s116, %s104
        $region20: #{tpu_custom_call.1} parent=15 // pred_fallthru
          _
      $region16: #{tpu_custom_call.1} parent=5 // pred_fallthru
        _
      %p119 = scmp.le.s32.totalorder 1, %s13
      %p120 = scmp.lt.s32.totalorder %s13, 3
      %p121 = pnand %p119, %p120
      %p122 = pneg %p121
      // Predicated region
      $region21: #{tpu_custom_call.1} parent=5 // pred_check
        _
      $region22: #{tpu_custom_call.1} parent=5 // pred_check_branch
        %124 = sbr.rel (%p121) target = $region24
      $region23: #{tpu_custom_call.1} parent=5 // pred_region
        %s125 = ssub.s32 %s13, 1
        %s126 = sand.u32 %s40, 1
        %s127 = scalar_lea.sflag [#allocation3], %s126
        %s128 = sand.u32 %s40, 1
        %s129 = smul.addr %s128, 8
        %s130 = scalar_lea.vmem [#allocation2], %s129
        // Predicated region
        $region25: #{tpu_custom_call.1} parent=23 // pred_check
          %p131 = pneg %p53
        $region26: #{tpu_custom_call.1} parent=23 // pred_check_branch
          %133 = sbr.rel (%p131) target = $region28
        $region27: #{tpu_custom_call.1} parent=23 // pred_region
          %134 = dma.done %s127, 128
        $region28: #{tpu_custom_call.1} parent=23 // pred_fallthru
          _
        %s135 = sand.u32 %s40, 1
        %s136 = scalar_lea.sflag [#allocation3], %s135
        %s137 = sand.u32 %s40, 1
        %s138 = smul.addr %s137, 8
        %s139 = scalar_lea.vmem [#allocation2], %s138
        %p140 = pneg %p53
        %p141 = pneg %p50
        %p142 = pneg %p81
        %p143 = pneg %p78
        %s144 = sand.u32 %s68, 1
        %s145 = scalar_lea.sflag [#allocation4], %s144
        %s146 = sand.u32 %s68, 1
        %s147 = smul.addr %s146, 8
        %s148 = scalar_lea.vmem [#allocation5], %s147
        %v149 = vlaneseq
        %v150 = vshrl.u32 %v149, 7
        %v151 = vlaneseq
        %v152 = vand.u32 %v151, 127
        %v153 = vsub.s32 %v150, 2
        %v154 = vadd.s32 %v153, 4
        %vm155 = vcmp.eq.s32.totalorder %v152, 0
        %v156 = vsel %vm155, %v153, %v152
        %vm157 = vcmp.eq.s32.totalorder %v152, 7
        %v158 = vsel %vm157, %v154, %v152
        %vm159 = vcmp.lt.s32.totalorder %v158, %v154
        %v160 = vsel %vm159, %v158, %v154
        %vm161 = vcmp.gt.s32.totalorder %v156, %v153
        %v162 = vsel %vm161, %v156, %v153
        %v163 = vsub.s32 %v160, %v162
        %v164 = vadd.s32 %v163, 1
        %vm165 = vcmp.gt.s32.totalorder %v164, 0
        %v166 = vsel %vm165, %v164, 0
        %vm167 = vcmp.lt.s32.totalorder %v166, 5
        %v168 = vsel %vm167, %v166, 5
        %v169 = vcvt.s32.f32 %v168
        %v170 = vld [vmem:[%s130] sm:$0xff]
        %vm171 = vcmask 64512
        %v173 = vsel %vm171, %v169, 0
        %175 = vmatprep.subr.mxu0 0.0
        %176 = vmatpush1.msra.mxu0 0.0
        %177 = vmatprep.subr.mxu0 0.0
        %178 = vmatpush1.msra.mxu0 0.0
        %179 = vmatprep.subr.mxu0 0.0
        %180 = vmatpush1.msra.mxu0 0.0
        %181 = vmatprep.subr.mxu0 0.0
        %182 = vmatpush1.msra.mxu0 0.0
        %183 = vmatprep.subr.mxu0 0.0
        %184 = vmatpush1.msra.mxu0 0.0
        %185 = vmatprep.subr.mxu0 0.0
        %186 = vmatpush1.msra.mxu0 0.0
        %187 = vmatprep.subr.mxu0 0.0
        %188 = vmatpush1.msra.mxu0 0.0
        %189 = vmatprep.subr.mxu0 0.0
        %190 = vmatpush1.msra.mxu0 0.0
        %191 = vmatprep.subr.mxu0 0.0
        %192 = vmatpush1.msra.mxu0 0.0
        %193 = vmatprep.subr.mxu0 0.0
        %194 = vmatpush1.msra.mxu0 0.0
        %195 = vmatprep.subr.mxu0 0.0
        %196 = vmatpush1.msra.mxu0 0.0
        %197 = vmatprep.subr.mxu0 0.0
        %198 = vmatpush1.msra.mxu0 0.0
        %199 = vmatprep.subr.mxu0 0.0
        %200 = vmatpush1.msra.mxu0 0.0
        %201 = vmatprep.subr.mxu0 0.0
        %202 = vmatpush1.msra.mxu0 0.0
        %203 = vmatprep.subr.mxu0 0.0
        %204 = vmatpush1.msra.mxu0 0.0
        %205 = vmatprep.subr.mxu0 0.0
        %206 = vmatpush1.msra.mxu0 %v170
        %207 = vmatprep.subr.mxu0 0.0
        %208 = vmatpush2.msra.mxu0 0.0
        %209 = vmatprep.subr.mxu0 0.0
        %210 = vmatpush2.msra.mxu0 0.0
        %211 = vmatprep.subr.mxu0 0.0
        %212 = vmatpush2.msra.mxu0 0.0
        %213 = vmatprep.subr.mxu0 0.0
        %214 = vmatpush2.msra.mxu0 0.0
        %215 = vmatprep.subr.mxu0 0.0
        %216 = vmatpush2.msra.mxu0 0.0
        %217 = vmatprep.subr.mxu0 0.0
        %218 = vmatpush2.msra.mxu0 0.0
        %219 = vmatprep.subr.mxu0 0.0
        %220 = vmatpush2.msra.mxu0 0.0
        %221 = vmatprep.subr.mxu0 0.0
        %222 = vmatpush2.msra.mxu0 0.0
        %223 = vmatprep.subr.mxu0 0.0
        %224 = vmatpush2.msra.mxu0 0.0
        %225 = vmatprep.subr.mxu0 0.0
        %226 = vmatpush2.msra.mxu0 0.0
        %227 = vmatprep.subr.mxu0 0.0
        %228 = vmatpush2.msra.mxu0 0.0
        %229 = vmatprep.subr.mxu0 0.0
        %230 = vmatpush2.msra.mxu0 0.0
        %231 = vmatprep.subr.mxu0 0.0
        %232 = vmatpush2.msra.mxu0 0.0
        %233 = vmatprep.subr.mxu0 0.0
        %234 = vmatpush2.msra.mxu0 0.0
        %235 = vmatprep.subr.mxu0 0.0
        %236 = vmatpush2.msra.mxu0 0.0
        %237 = vmatprep.subr.mxu0 0.0
        %238 = vmatpush2.msra.mxu0 0.0
        %239 = vmatprep.mubr.f32.mxu0 0.0
        %240 = vmatmul.mubr.f32.gmra.mxu0 %v173
        %v241 = vpop.f32.mrf.mxu0
        %v242 = vadd.f32 0.0, %v241
        %v243 = vpop.f32.mrf.mxu0
        %244 = vdwg.mxu0
        %v245 = vmul.f32 %v242, 0.2
        %vm246 = vcmask 261120
        %247 = vst.msk [vmem:[%s148] sm:$0xff] %vm246, %v245
        %s248 = sand.u32 %s68, 1
        %s249 = scalar_lea.sflag [#allocation4], %s248
        %s250 = sand.u32 %s68, 1
        %s251 = smul.addr %s250, 8
        %s252 = scalar_lea.vmem [#allocation5], %s251
        // Predicated region
        $region29: #{tpu_custom_call.1} parent=23 // pred_check
          %p253 = pneg %p78
        $region30: #{tpu_custom_call.1} parent=23 // pred_check_branch
          %255 = sbr.rel (%p253) target = $region32
        $region31: #{tpu_custom_call.1} parent=23 // pred_region
          %s257 = ssub.s32 128, 128
          %258 = vsyncadd %s249, %s257
          %s259 = sadd.s32 %s23, %s22
          %s260 = smul.addr %s259, 128
          %s261 = scalar_lea.hbm %s1, %s260
          %s263 = sshll.u32 %s252, 4
          %s264 = int_to_ptr.vmem [resolvable:$true] %s263
          %266 = dma.vmem_to_hbm [thread:$0]  %s264, 128, %s261, %s249
        $region32: #{tpu_custom_call.1} parent=23 // pred_fallthru
          _
      $region24: #{tpu_custom_call.1} parent=5 // pred_fallthru
        _
      %p267 = scmp.le.s32.totalorder 2, %s13
      // Predicated region
      $region33: #{tpu_custom_call.1} parent=5 // pred_check
        %p268 = pneg %p267
      $region34: #{tpu_custom_call.1} parent=5 // pred_check_branch
        %270 = sbr.rel (%p268) target = $region36
      $region35: #{tpu_custom_call.1} parent=5 // pred_region
        %s271 = ssub.s32 %s13, 2
        // Predicated region
        $region37: #{tpu_custom_call.1} parent=35 // pred_check
          %p272 = pneg %p84
        $region38: #{tpu_custom_call.1} parent=35 // pred_check_branch
          %274 = sbr.rel (%p272) target = $region40
        $region39: #{tpu_custom_call.1} parent=35 // pred_region
          %s275 = sand.u32 %s69, 1
          %s276 = scalar_lea.sflag [#allocation4], %s275
          %s277 = sand.u32 %s69, 1
          %s278 = smul.addr %s277, 8
          %s279 = scalar_lea.vmem [#allocation5], %s278
          %280 = dma.done %s276, 128
        $region40: #{tpu_custom_call.1} parent=35 // pred_fallthru
          _
      $region36: #{tpu_custom_call.1} parent=5 // pred_fallthru
        _
    $region6: #{tpu_custom_call.1} parent=1 // loop_footer
      %s17 = sadd.s32 1, %s13
    $region7: #{tpu_custom_call.1} parent=1 // loop_footer_branch
      %12 = sbr.rel target = $region3
    $region8: #{tpu_custom_call.1} parent=1 // loop_exit
      _
    %281 = vsyncpa [#allocation3], 1
    %s282 = scalar_lea.sflag [#allocation3], 1
    %283 = vsyncpa %s282, 1
    %284 = vsyncpa [#allocation4], 1
    %s285 = scalar_lea.sflag [#allocation4], 1
    %286 = vsyncpa %s285, 1

</llo_original>
